<compile_context>
chip_gen: v5e
topology: v5e:2x2
jax: 0.10.0
libtpu: 0.0.40
codegen_flags: <defaults>
</compile_context>

<pallas_src>
import jax
import jax.numpy as jnp
from jax import lax
from jax.experimental import pallas as pl
from jax.experimental.pallas import tpu as pltpu

K = 3  # pooling window == stride (MaxPool2d(kernel_size=3) defaults)


def _shift_lanes_left(a, k):
    """out[..., v] = a[..., v + k]; the wrapped tail lanes are never consumed."""
    return jnp.concatenate([a[..., k:], a[..., :k]], axis=-1)


def _maxpool3x3_kernel(x_ref, o_ref):
    # x_ref: (TB, TH, W) block of the (N*C, H, W) input (W on lanes, H on
    #        sublanes, planes on the untiled outer axis).
    # o_ref: (TB, THo, Wo) block of the (N*C, Ho, Wo) output.
    tb, tho, wo = o_ref.shape

    # ---- H reduction first: three stride-3 row reads (sublane axis), each
    #      contiguous along lanes, combined with 2 maximums -> (TB, THo, W).
    r = x_ref[:, pl.ds(0, tho, stride=K), :]
    r = jnp.maximum(r, x_ref[:, pl.ds(1, tho, stride=K), :])
    r = jnp.maximum(r, x_ref[:, pl.ds(2, tho, stride=K), :])

    # ---- W reduction on the 3x smaller temporary.
    # Sliding max: m[..., c] = max(r[..., c], r[..., c+1], r[..., c+2]).
    m = jnp.maximum(r, _shift_lanes_left(r, 1))
    m = jnp.maximum(m, _shift_lanes_left(r, 2))

    # Lane compaction m[..., 3v] -> lane v.  Lane v needs a total left shift
    # of 2v, applied one bit at a time (LSB -> MSB): at step b, lanes whose
    # bit (b-1) is set take the value 2**b lanes to their right.  This is a
    # pure data-movement/select network (exact for any values), avoiding
    # stride-3 accesses on the lane axis which have no native load path.
    lane = lax.broadcasted_iota(jnp.int32, m.shape, m.ndim - 1)
    max_shift = 2 * (wo - 1)
    b = 1
    while (1 << b) <= max_shift:
        take = (lane & (1 << (b - 1))) > 0          # bit b of (2 * lane)
        m = jnp.where(take, _shift_lanes_left(m, 1 << b), m)
        b += 1

    o_ref[...] = m[..., :wo]  # single dense store of the final block


def _pick_tiles(nc, h, w, ho, wo, itemsize, target_bytes=4 << 20):
    """Choose (planes per block TB, rows per block TH) for (N*C, H, W) blocks."""
    def rup(a, m):  # VMEM tiles pad the minor two dims to (8, 128)
        return -(-a // m) * m

    in_plane = rup(h, 8) * rup(w, 128) * itemsize
    out_plane = rup(ho, 8) * rup(wo, 128) * itemsize
    tb = max(1, target_bytes // (in_plane + out_plane))
    if nc >= 2:
        # >= 2 steps along the "parallel" plane axis keeps both v7x TCs busy.
        tb = min(tb, -(-nc // 2))
    tb = int(min(tb, nc))

    # Tile H only when a single plane overflows the budget.  TH must be a
    # multiple of 24: 3 so pooling windows never straddle blocks, 8 for the
    # sublane tile constraint.  Otherwise use the full H extent.
    th = h
    if tb == 1 and in_plane > target_bytes and ho > 8:
        rows = (target_bytes // (rup(w, 128) * itemsize)) // 24 * 24
        rows = max(24, rows)
        if rows < h:
            th = int(rows)
    return tb, th


@jax.jit
def maxpool2d_3x3(x):
    """MaxPool2d(kernel_size=3), floor mode, on NCHW input -> (N, C, H//3, W//3)."""
    n, c, h, w = x.shape
    ho, wo = h // K, w // K
    if ho == 0 or wo == 0:
        return jnp.zeros((n, c, ho, wo), x.dtype)
    nc = n * c
    itemsize = jnp.dtype(x.dtype).itemsize

    xv = x.reshape(nc, h, w)                       # free: merges leading dims
    tb, th = _pick_tiles(nc, h, w, ho, wo, itemsize)
    tho = ho if th == h else th // K
    grid = (pl.cdiv(nc, tb), pl.cdiv(ho, tho))

    out = pl.pallas_call(
        _maxpool3x3_kernel,
        out_shape=jax.ShapeDtypeStruct((nc, ho, wo), x.dtype),
        grid_spec=pl.GridSpec(
            grid=grid,
            in_specs=[pl.BlockSpec((tb, th, w), lambda b, i: (b, i, 0))],
            out_specs=pl.BlockSpec((tb, tho, wo), lambda b, i: (b, i, 0)),
        ),
        compiler_params=pltpu.CompilerParams(
            dimension_semantics=("parallel", "parallel"),
            vmem_limit_bytes=32 * 1024 * 1024),
        cost_estimate=pl.CostEstimate(
            flops=8 * nc * ho * wo,
            transcendentals=0,
            bytes_accessed=(nc * h * w + nc * ho * wo) * itemsize),
    )(xv)
    return out.reshape(n, c, ho, wo)               # free: splits leading dim


if __name__ == "__main__":
    key = jax.random.PRNGKey(0)
    x = jax.random.normal(key, (2, 4, 16, 16), dtype=jnp.float32)

    y = jax.block_until_ready(maxpool2d_3x3(x))
    y_ref = lax.reduce_window(x, -jnp.inf, lax.max,
                              window_dimensions=(1, 1, K, K),
                              window_strides=(1, 1, K, K),
                              padding="VALID")
    assert y.shape == (2, 4, 5, 5), y.shape
    assert jnp.allclose(y, y_ref), "maxpool mismatch vs reference"

    # Ragged case: N*C not a multiple of the plane tile, H and W not multiples
    # of 3 (floor mode) -> exercises partial-block masking.
    x2 = jax.random.normal(jax.random.PRNGKey(1), (3, 5, 11, 20), jnp.float32)
    y2 = jax.block_until_ready(maxpool2d_3x3(x2))
    y2_ref = lax.reduce_window(x2, -jnp.inf, lax.max,
                               window_dimensions=(1, 1, K, K),
                               window_strides=(1, 1, K, K),
                               padding="VALID")
    assert y2.shape == (3, 5, 3, 6), y2.shape
    assert jnp.allclose(y2, y2_ref), "maxpool mismatch vs reference (ragged)"

    print("KERNEL_OK")
</pallas_src>

<mosaic_0001>
module attributes {stable_mosaic.version = 11 : i64} {
  func.func @_maxpool3x3_kernel(%arg0: i32, %arg1: i32, %arg2: memref<4x16x16xf32, #tpu.memory_space<vmem>>, %arg3: memref<4x5x5xf32, #tpu.memory_space<vmem>>) attributes {dimension_semantics = [#tpu.dimension_semantics<parallel>, #tpu.dimension_semantics<parallel>], iteration_bounds = array<i64: 2, 1>, scalar_prefetch = 0 : i64, scratch_operands = 0 : i64, tpu.core_type = #tpu.core_type<tc>, window_params = [{transform_indices = @transform_0, window_bounds = array<i64: 4, 16, 16>}, {transform_indices = @transform_1, window_bounds = array<i64: 4, 5, 5>}]} {
    %c0 = arith.constant 0 : index
    %c0_0 = arith.constant 0 : index
    %c0_1 = arith.constant 0 : index
    %0 = tpu.strided_load %arg2[%c0, %c0_0, %c0_1] {strides = array<i32: 1, 3, 1>} : memref<4x16x16xf32, #tpu.memory_space<vmem>>, vector<4x5x16xf32>
    %c0_2 = arith.constant 0 : index
    %c1 = arith.constant 1 : index
    %c0_3 = arith.constant 0 : index
    %1 = tpu.strided_load %arg2[%c0_2, %c1, %c0_3] {strides = array<i32: 1, 3, 1>} : memref<4x16x16xf32, #tpu.memory_space<vmem>>, vector<4x5x16xf32>
    %2 = arith.maximumf %0, %1 : vector<4x5x16xf32>
    %c0_4 = arith.constant 0 : index
    %c2 = arith.constant 2 : index
    %c0_5 = arith.constant 0 : index
    %3 = tpu.strided_load %arg2[%c0_4, %c2, %c0_5] {strides = array<i32: 1, 3, 1>} : memref<4x16x16xf32, #tpu.memory_space<vmem>>, vector<4x5x16xf32>
    %4 = arith.maximumf %2, %3 : vector<4x5x16xf32>
    %5 = vector.extract_strided_slice %4 {offsets = [0, 0, 1], sizes = [4, 5, 15], strides = [1, 1, 1]} : vector<4x5x16xf32> to vector<4x5x15xf32>
    %6 = vector.extract_strided_slice %4 {offsets = [0, 0, 0], sizes = [4, 5, 1], strides = [1, 1, 1]} : vector<4x5x16xf32> to vector<4x5x1xf32>
    %7 = tpu.concatenate %5, %6 in 2 : vector<4x5x15xf32>, vector<4x5x1xf32> -> vector<4x5x16xf32>
    %8 = arith.maximumf %4, %7 : vector<4x5x16xf32>
    %9 = vector.extract_strided_slice %4 {offsets = [0, 0, 2], sizes = [4, 5, 14], strides = [1, 1, 1]} : vector<4x5x16xf32> to vector<4x5x14xf32>
    %10 = vector.extract_strided_slice %4 {offsets = [0, 0, 0], sizes = [4, 5, 2], strides = [1, 1, 1]} : vector<4x5x16xf32> to vector<4x5x2xf32>
    %11 = tpu.concatenate %9, %10 in 2 : vector<4x5x14xf32>, vector<4x5x2xf32> -> vector<4x5x16xf32>
    %12 = arith.maximumf %8, %11 : vector<4x5x16xf32>
    %13 = tpu.iota {dimensions = array<i32: 2>} : vector<4x5x16xi32>
    %c1_i32 = arith.constant 1 : i32
    %14 = vector.broadcast %c1_i32 : i32 to vector<4x5x16xi32>
    %15 = arith.andi %13, %14 : vector<4x5x16xi32>
    %c0_i32 = arith.constant 0 : i32
    %16 = vector.broadcast %c0_i32 : i32 to vector<4x5x16xi32>
    %17 = arith.cmpi sgt, %15, %16 : vector<4x5x16xi32>
    %18 = vector.extract_strided_slice %12 {offsets = [0, 0, 2], sizes = [4, 5, 14], strides = [1, 1, 1]} : vector<4x5x16xf32> to vector<4x5x14xf32>
    %19 = vector.extract_strided_slice %12 {offsets = [0, 0, 0], sizes = [4, 5, 2], strides = [1, 1, 1]} : vector<4x5x16xf32> to vector<4x5x2xf32>
    %20 = tpu.concatenate %18, %19 in 2 : vector<4x5x14xf32>, vector<4x5x2xf32> -> vector<4x5x16xf32>
    %21 = arith.select %17, %20, %12 : vector<4x5x16xi1>, vector<4x5x16xf32>
    %c2_i32 = arith.constant 2 : i32
    %22 = vector.broadcast %c2_i32 : i32 to vector<4x5x16xi32>
    %23 = arith.andi %13, %22 : vector<4x5x16xi32>
    %c0_i32_6 = arith.constant 0 : i32
    %24 = vector.broadcast %c0_i32_6 : i32 to vector<4x5x16xi32>
    %25 = arith.cmpi sgt, %23, %24 : vector<4x5x16xi32>
    %26 = vector.extract_strided_slice %21 {offsets = [0, 0, 4], sizes = [4, 5, 12], strides = [1, 1, 1]} : vector<4x5x16xf32> to vector<4x5x12xf32>
    %27 = vector.extract_strided_slice %21 {offsets = [0, 0, 0], sizes = [4, 5, 4], strides = [1, 1, 1]} : vector<4x5x16xf32> to vector<4x5x4xf32>
    %28 = tpu.concatenate %26, %27 in 2 : vector<4x5x12xf32>, vector<4x5x4xf32> -> vector<4x5x16xf32>
    %29 = arith.select %25, %28, %21 : vector<4x5x16xi1>, vector<4x5x16xf32>
    %c4_i32 = arith.constant 4 : i32
    %30 = vector.broadcast %c4_i32 : i32 to vector<4x5x16xi32>
    %31 = arith.andi %13, %30 : vector<4x5x16xi32>
    %c0_i32_7 = arith.constant 0 : i32
    %32 = vector.broadcast %c0_i32_7 : i32 to vector<4x5x16xi32>
    %33 = arith.cmpi sgt, %31, %32 : vector<4x5x16xi32>
    %34 = vector.extract_strided_slice %29 {offsets = [0, 0, 8], sizes = [4, 5, 8], strides = [1, 1, 1]} : vector<4x5x16xf32> to vector<4x5x8xf32>
    %35 = vector.extract_strided_slice %29 {offsets = [0, 0, 0], sizes = [4, 5, 8], strides = [1, 1, 1]} : vector<4x5x16xf32> to vector<4x5x8xf32>
    %36 = tpu.concatenate %34, %35 in 2 : vector<4x5x8xf32>, vector<4x5x8xf32> -> vector<4x5x16xf32>
    %37 = arith.select %33, %36, %29 : vector<4x5x16xi1>, vector<4x5x16xf32>
    %38 = vector.extract_strided_slice %37 {offsets = [0, 0, 0], sizes = [4, 5, 5], strides = [1, 1, 1]} : vector<4x5x16xf32> to vector<4x5x5xf32>
    %c0_8 = arith.constant 0 : index
    %c0_9 = arith.constant 0 : index
    %c0_10 = arith.constant 0 : index
    %39 = vector.load %arg3[%c0_8, %c0_9, %c0_10] : memref<4x5x5xf32, #tpu.memory_space<vmem>>, vector<4x5x5xf32>
    tpu.vector_store %arg3[%c0_8, %c0_9, %c0_10], %38 {strides = array<i32>} : memref<4x5x5xf32, #tpu.memory_space<vmem>>, vector<4x5x5xf32>,
    return
  }
  func.func @transform_0(%arg0: i32, %arg1: i32) -> (i32, i32, i32) {
    %c0_i32 = arith.constant 0 : i32
    %c0_i32_0 = arith.constant 0 : i32
    return %arg0, %arg1, %c0_i32 : i32, i32, i32
  }
  func.func @transform_1(%arg0: i32, %arg1: i32) -> (i32, i32, i32) {
    %c0_i32 = arith.constant 0 : i32
    %c0_i32_0 = arith.constant 0 : i32
    return %arg0, %arg1, %c0_i32 : i32, i32, i32
  }
}

</mosaic_0001>

<llo_original>
// kernel: maxpool2d_3x3.1
$region0: #{maxpool2d_3x3.1}
  #allocation0 [shape = 'u32[]', space=smem, size = 0x4, offset = 0x4, fixed_abs, tag = 'smem constant byte address 0x4 - core index']
  #allocation1 [shape = 'u32[72,128]{1,0:T(1,128)}', space=vmem, size = 0x9000, scoped, tag = 'internal scratch']
  %s0 = inlined_call_operand.hbm [shape: f32[8,16,16], index: 0, kind: input, shape index: {}]
  %s1 = inlined_call_operand.vmem [shape: f32[8,5,5], index: 1, kind: output, shape index: {}]
  %s2 = sld [smem:[#allocation0]]
  $region41: #{maxpool2d_3x3.1} parent=0
    _
  %s4 = ssub.s32 1, %s2
  %s5 = scalar_select 0, %s4, %s2
  $region1: #{maxpool2d_3x3.1} parent=0
    #allocation2 [shape = 'u8[65536]{0}', space=vmem, size = 0x10000, scoped, tag = 'input window, operand 0']
    #allocation3 [shape = 's32[2]{0}', space=sflag, size = 0x8, scoped, tag = 'scoped memory for maxpool2d_3x3.1']
    %6 = vsyncpa [#allocation3], 0
    %s7 = scalar_lea.sflag [#allocation3], 1
    %8 = vsyncpa %s7, 0
    loop: start=0, step=1, limit=4
    $region2: #{maxpool2d_3x3.1} parent=1 // loop_pre_header
      _
    $region3: #{maxpool2d_3x3.1} parent=1 // loop_header
      %s10 = sphi 0, %s14
      %p11 = scmp.ge.s32.totalorder %s10, 4
      %s17 = sphi 0, %s29
      %s18 = sphi 0, %s25
      %s19 = sphi 0, %s17
      %s20 = sphi 0, %s18
      %s21 = sphi 0, %s19
      %s22 = sphi 0, %s20
      %s34 = sphi 0, %s36
      %s37 = sphi 0, %s34
      %s38 = sphi 0, %s37
      %s54 = sphi 0, %s38
      %s62 = sphi 0, %s64
      %s65 = sphi 0, %s62
      %s66 = sphi 0, %s65
      %s82 = sphi 0, %s66
    $region4: #{maxpool2d_3x3.1} parent=1 // loop_header_branch
      %13 = sbr.rel (%p11) target = $region8
    $region5: #{maxpool2d_3x3.1} parent=1 // loop_body
      %s15 = ssub.s32 %s10, 1
      %s16 = ssub.s32 %s10, 2
      %s23 = sadd.s32 1, %s18
      %p24 = scmp.ge.s32.totalorder %s23, 1
      %s25 = scalar_select %p24, 0, %s23
      %s26 = sadd.s32 1, %s17
      %s27 = scalar_select %p24, %s26, %s17
      %p28 = scmp.ge.s32.totalorder %s27, 2
      %s29 = scalar_select %p28, 0, %s27
      %s30 = ssub.s32 %s17, %s29
      %s31 = ssub.s32 %s18, %s25
      %s32 = sor.u32 %s30, %s31
      %p33 = scmp.eq.s32.totalorder %s32, 0
      %s35 = sadd.s32 %s34, 1
      %s36 = scalar_select %p33, %s34, %s35
      %p39 = pneg %p33
      %p40 = scmp.eq.s32.totalorder %s10, 1
      %p41 = por %p39, %p40
      %p42 = scmp.ne.s32.totalorder %s34, %s37
      %p43 = scmp.eq.s32.totalorder %s10, 0
      %p44 = por %p42, %p43
      %p45 = scmp.ne.s32.totalorder %s34, %s37
      %p46 = scmp.eq.s32.totalorder %s15, 1
      %p47 = por %p45, %p46
      %p48 = scmp.ne.s32.totalorder %s37, %s38
      %p49 = scmp.eq.s32.totalorder %s15, 0
      %p50 = por %p48, %p49
      %p51 = scmp.ne.s32.totalorder %s37, %s38
      %p52 = scmp.eq.s32.totalorder %s16, 1
      %p53 = por %p51, %p52
      %p55 = scmp.ne.s32.totalorder %s38, %s54
      %p56 = scmp.eq.s32.totalorder %s16, 0
      %p57 = por %p55, %p56
      %s58 = ssub.s32 %s17, %s29
      %s59 = ssub.s32 %s18, %s25
      %s60 = sor.u32 %s58, %s59
      %p61 = scmp.eq.s32.totalorder %s60, 0
      %s63 = sadd.s32 %s62, 1
      %s64 = scalar_select %p61, %s62, %s63
      %p67 = pneg %p61
      %p68 = scmp.eq.s32.totalorder %s10, 1
      %p69 = por %p67, %p68
      %p70 = scmp.ne.s32.totalorder %s62, %s65
      %p71 = scmp.eq.s32.totalorder %s10, 0
      %p72 = por %p70, %p71
      %p73 = scmp.ne.s32.totalorder %s62, %s65
      %p74 = scmp.eq.s32.totalorder %s15, 1
      %p75 = por %p73, %p74
      %p76 = scmp.ne.s32.totalorder %s65, %s66
      %p77 = scmp.eq.s32.totalorder %s15, 0
      %p78 = por %p76, %p77
      %p79 = scmp.ne.s32.totalorder %s65, %s66
      %p80 = scmp.eq.s32.totalorder %s16, 1
      %p81 = por %p79, %p80
      %p83 = scmp.ne.s32.totalorder %s66, %s82
      %p84 = scmp.eq.s32.totalorder %s16, 0
      %p85 = por %p83, %p84
      %p86 = scmp.le.s32.totalorder 1, %s10
      %p87 = scmp.lt.s32.totalorder %s10, 3
      %p88 = pnand %p86, %p87
      %p89 = pneg %p88
      // Predicated region
      $region9: #{maxpool2d_3x3.1} parent=5 // pred_check
        _
      $region10: #{maxpool2d_3x3.1} parent=5 // pred_check_branch
        %91 = sbr.rel (%p88) target = $region12
      $region11: #{maxpool2d_3x3.1} parent=5 // pred_region
        %s92 = ssub.s32 %s10, 1
      $region12: #{maxpool2d_3x3.1} parent=5 // pred_fallthru
        _
      %p93 = scmp.lt.s32.totalorder %s10, 2
      // Predicated region
      $region13: #{maxpool2d_3x3.1} parent=5 // pred_check
        %p94 = pneg %p93
      $region14: #{maxpool2d_3x3.1} parent=5 // pred_check_branch
        %96 = sbr.rel (%p94) target = $region16
      $region15: #{maxpool2d_3x3.1} parent=5 // pred_region
        // Predicated region
        $region17: #{maxpool2d_3x3.1} parent=15 // pred_check
          %p97 = pneg %p44
        $region18: #{maxpool2d_3x3.1} parent=15 // pred_check_branch
          %99 = sbr.rel (%p97) target = $region20
        $region19: #{maxpool2d_3x3.1} parent=15 // pred_region
          %s100 = sand.u32 %s34, 1
          %s101 = scalar_lea.sflag [#allocation3], %s100
          %s102 = sand.u32 %s34, 1
          %s103 = smul.addr %s102, 64
          %s104 = scalar_lea.vmem [#allocation2], %s103
          %s105 = smul.u32 4, %s17
          %s106 = smul.u32 2, %s18
          %108 = vsyncadd %s101, 0
          %s109 = smul.addr %s105, 2
          %s110 = sadd.s32 %s106, %s109
          %s111 = smul.addr %s110, 8
          %s112 = scalar_lea.hbm %s0, %s111
          %s113 = sshll.u32 %s112, 4
          %s114 = int_to_ptr.hbm [resolvable:$true] %s113
          %s115 = sshll.u32 %s104, 4
          %s116 = int_to_ptr.vmem [resolvable:$true] %s115
          %121 = dma.hbm_to_vmem [thread:$0]  %s114, 1024, %s116, %s101, 128, 128, 8
        $region20: #{maxpool2d_3x3.1} parent=15 // pred_fallthru
          _
      $region16: #{maxpool2d_3x3.1} parent=5 // pred_fallthru
        _
      %p122 = scmp.le.s32.totalorder 1, %s10
      %p123 = scmp.lt.s32.totalorder %s10, 3
      %p124 = pnand %p122, %p123
      %p125 = pneg %p124
      // Predicated region
      $region21: #{maxpool2d_3x3.1} parent=5 // pred_check
        _
      $region22: #{maxpool2d_3x3.1} parent=5 // pred_check_branch
        %127 = sbr.rel (%p124) target = $region24
      $region23: #{maxpool2d_3x3.1} parent=5 // pred_region
        %s128 = ssub.s32 %s10, 1
        %s129 = sand.u32 %s37, 1
        %s130 = scalar_lea.sflag [#allocation3], %s129
        %s131 = sand.u32 %s37, 1
        %s132 = smul.addr %s131, 64
        %s133 = scalar_lea.vmem [#allocation2], %s132
        // Predicated region
        $region25: #{maxpool2d_3x3.1} parent=23 // pred_check
          %p134 = pneg %p50
        $region26: #{maxpool2d_3x3.1} parent=23 // pred_check_branch
          %136 = sbr.rel (%p134) target = $region28
        $region27: #{maxpool2d_3x3.1} parent=23 // pred_region
          %138 = dma.done %s130, 1024
        $region28: #{maxpool2d_3x3.1} parent=23 // pred_fallthru
          _
        %s139 = sand.u32 %s37, 1
        %s140 = scalar_lea.sflag [#allocation3], %s139
        %s141 = sand.u32 %s37, 1
        %s142 = smul.addr %s141, 64
        %s143 = scalar_lea.vmem [#allocation2], %s142
        %p144 = pneg %p50
        %p145 = pneg %p47
        %p146 = pneg %p78
        %p147 = pneg %p75
        %s148 = smul.u32 4, %s19
        %p149 = scmp.lt.s32.totalorder %s148, 7
        %s150 = scalar_select %p149, %s148, 7
        %p151 = scmp.lt.s32.totalorder %s20, 0
        %s152 = scalar_select %p151, %s20, 0
        %s153 = sadd.s32 %s152, %s150
        %s154 = smul.addr %s153, 8
        %s155 = scalar_lea.vmem %s1, %s154
        %s156 = smul.u32 4, %s19
        %s157 = smul.u32 2, %s20
        %s158 = smul.u32 4, %s19
        %p159 = scmp.lt.s32.totalorder %s158, 7
        %s160 = scalar_select %p159, %s158, 7
        %p161 = scmp.lt.s32.totalorder %s20, 0
        %s162 = scalar_select %p161, %s20, 0
        %s163 = sadd.s32 %s162, %s160
        %s164 = smul.addr %s163, 8
        %s165 = scalar_lea.vmem %s1, %s164
        %s166 = smul.u32 4, %s19
        %v167 = vld [vmem:[%s133] ss:$3 sm:$0x1f]
        %s168 = scalar_lea.vmem %s133, 16 [#allocation2]
        %v169 = vld [vmem:[%s168] ss:$3 sm:$0x1f]
        %s170 = scalar_lea.vmem %s133, 32 [#allocation2]
        %v171 = vld [vmem:[%s170] ss:$3 sm:$0x1f]
        %s172 = scalar_lea.vmem %s133, 48 [#allocation2]
        %v173 = vld [vmem:[%s172] ss:$3 sm:$0x1f]
        %s174 = scalar_lea.vmem %s133, 1 [#allocation2]
        %v175 = vld [vmem:[%s174] ss:$3 sm:$0x1f]
        %s176 = scalar_lea.vmem %s133, 17 [#allocation2]
        %v177 = vld [vmem:[%s176] ss:$3 sm:$0x1f]
        %s178 = scalar_lea.vmem %s133, 33 [#allocation2]
        %v179 = vld [vmem:[%s178] ss:$3 sm:$0x1f]
        %s180 = scalar_lea.vmem %s133, 49 [#allocation2]
        %v181 = vld [vmem:[%s180] ss:$3 sm:$0x1f]
        %v182 = vmax.f32 %v167, %v175
        %v183 = vmax.f32 %v169, %v177
        %v184 = vmax.f32 %v171, %v179
        %v185 = vmax.f32 %v173, %v181
        %s186 = scalar_lea.vmem %s133, 2 [#allocation2]
        %v187 = vld [vmem:[%s186] ss:$3 sm:$0x1f]
        %s188 = scalar_lea.vmem %s133, 18 [#allocation2]
        %v189 = vld [vmem:[%s188] ss:$3 sm:$0x1f]
        %s190 = scalar_lea.vmem %s133, 34 [#allocation2]
        %v191 = vld [vmem:[%s190] ss:$3 sm:$0x1f]
        %s192 = scalar_lea.vmem %s133, 50 [#allocation2]
        %v193 = vld [vmem:[%s192] ss:$3 sm:$0x1f]
        %v194 = vmax.f32 %v182, %v187
        %v195 = vmax.f32 %v183, %v189
        %v196 = vmax.f32 %v184, %v191
        %v197 = vmax.f32 %v185, %v193
        %202 = vrot.lane.b32.xlu0 %v194, 127
        %v203 = vpop.permute.xlu0 %202
        %204 = vrot.lane.b32.xlu0 %v195, 127
        %v205 = vpop.permute.xlu0 %204
        %206 = vrot.lane.b32.xlu0 %v196, 127
        %v207 = vpop.permute.xlu0 %206
        %208 = vrot.lane.b32.xlu0 %v197, 127
        %v209 = vpop.permute.xlu0 %208
        %214 = vrot.lane.b32.xlu0 %v194, 15
        %v215 = vpop.permute.xlu0 %214
        %216 = vrot.lane.b32.xlu0 %v195, 15
        %v217 = vpop.permute.xlu0 %216
        %218 = vrot.lane.b32.xlu0 %v196, 15
        %v219 = vpop.permute.xlu0 %218
        %220 = vrot.lane.b32.xlu0 %v197, 15
        %v221 = vpop.permute.xlu0 %220
        %vm226 = vcmask 121856
        %v227 = vsel %vm226, %v203, %v215
        %v228 = vsel %vm226, %v205, %v217
        %v229 = vsel %vm226, %v207, %v219
        %v230 = vsel %vm226, %v209, %v221
        %v231 = vmax.f32 %v194, %v227
        %v232 = vmax.f32 %v195, %v228
        %v233 = vmax.f32 %v196, %v229
        %v234 = vmax.f32 %v197, %v230
        %235 = vrot.lane.b32.xlu0 %v194, 126
        %v236 = vpop.permute.xlu0 %235
        %237 = vrot.lane.b32.xlu0 %v195, 126
        %v238 = vpop.permute.xlu0 %237
        %239 = vrot.lane.b32.xlu0 %v196, 126
        %v240 = vpop.permute.xlu0 %239
        %241 = vrot.lane.b32.xlu0 %v197, 126
        %v242 = vpop.permute.xlu0 %241
        %247 = vrot.lane.b32.xlu0 %v194, 14
        %v248 = vpop.permute.xlu0 %247
        %249 = vrot.lane.b32.xlu0 %v195, 14
        %v250 = vpop.permute.xlu0 %249
        %251 = vrot.lane.b32.xlu0 %v196, 14
        %v252 = vpop.permute.xlu0 %251
        %253 = vrot.lane.b32.xlu0 %v197, 14
        %v254 = vpop.permute.xlu0 %253
        %vm259 = vcmask 113664
        %v260 = vsel %vm259, %v236, %v248
        %v261 = vsel %vm259, %v238, %v250
        %v262 = vsel %vm259, %v240, %v252
        %v263 = vsel %vm259, %v242, %v254
        %v264 = vmax.f32 %v231, %v260
        %v265 = vmax.f32 %v232, %v261
        %v266 = vmax.f32 %v233, %v262
        %v267 = vmax.f32 %v234, %v263
        %v268 = vlaneseq
        %v269 = vand.u32 %v268, 127
        %v270 = vand.u32 %v269, 1
        %vm271 = vcmp.gt.s32.totalorder %v270, 0
        %276 = vrot.lane.b32.xlu0 %v264, 126
        %v277 = vpop.permute.xlu0 %276
        %278 = vrot.lane.b32.xlu0 %v265, 126
        %v279 = vpop.permute.xlu0 %278
        %280 = vrot.lane.b32.xlu0 %v266, 126
        %v281 = vpop.permute.xlu0 %280
        %282 = vrot.lane.b32.xlu0 %v267, 126
        %v283 = vpop.permute.xlu0 %282
        %288 = vrot.lane.b32.xlu0 %v264, 14
        %v289 = vpop.permute.xlu0 %288
        %290 = vrot.lane.b32.xlu0 %v265, 14
        %v291 = vpop.permute.xlu0 %290
        %292 = vrot.lane.b32.xlu0 %v266, 14
        %v293 = vpop.permute.xlu0 %292
        %294 = vrot.lane.b32.xlu0 %v267, 14
        %v295 = vpop.permute.xlu0 %294
        %v300 = vsel %vm259, %v277, %v289
        %v301 = vsel %vm259, %v279, %v291
        %v302 = vsel %vm259, %v281, %v293
        %v303 = vsel %vm259, %v283, %v295
        %v304 = vsel %vm271, %v300, %v264
        %v305 = vsel %vm271, %v301, %v265
        %v306 = vsel %vm271, %v302, %v266
        %v307 = vsel %vm271, %v303, %v267
        %v308 = vand.u32 %v269, 2
        %vm309 = vcmp.gt.s32.totalorder %v308, 0
        %314 = vrot.lane.b32.xlu0 %v304, 124
        %v315 = vpop.permute.xlu0 %314
        %316 = vrot.lane.b32.xlu0 %v305, 124
        %v317 = vpop.permute.xlu0 %316
        %318 = vrot.lane.b32.xlu0 %v306, 124
        %v319 = vpop.permute.xlu0 %318
        %320 = vrot.lane.b32.xlu0 %v307, 124
        %v321 = vpop.permute.xlu0 %320
        %326 = vrot.lane.b32.xlu0 %v304, 12
        %v327 = vpop.permute.xlu0 %326
        %328 = vrot.lane.b32.xlu0 %v305, 12
        %v329 = vpop.permute.xlu0 %328
        %330 = vrot.lane.b32.xlu0 %v306, 12
        %v331 = vpop.permute.xlu0 %330
        %332 = vrot.lane.b32.xlu0 %v307, 12
        %v333 = vpop.permute.xlu0 %332
        %vm338 = vcmask 97280
        %v339 = vsel %vm338, %v315, %v327
        %v340 = vsel %vm338, %v317, %v329
        %v341 = vsel %vm338, %v319, %v331
        %v342 = vsel %vm338, %v321, %v333
        %v343 = vsel %vm309, %v339, %v304
        %v344 = vsel %vm309, %v340, %v305
        %v345 = vsel %vm309, %v341, %v306
        %v346 = vsel %vm309, %v342, %v307
        %v347 = vand.u32 %v269, 4
        %vm348 = vcmp.gt.s32.totalorder %v347, 0
        %353 = vrot.lane.b32.xlu0 %v343, 120
        %v354 = vpop.permute.xlu0 %353
        %355 = vrot.lane.b32.xlu0 %v344, 120
        %v356 = vpop.permute.xlu0 %355
        %357 = vrot.lane.b32.xlu0 %v345, 120
        %v358 = vpop.permute.xlu0 %357
        %359 = vrot.lane.b32.xlu0 %v346, 120
        %v360 = vpop.permute.xlu0 %359
        %365 = vrot.lane.b32.xlu0 %v343, 8
        %v366 = vpop.permute.xlu0 %365
        %367 = vrot.lane.b32.xlu0 %v344, 8
        %v368 = vpop.permute.xlu0 %367
        %369 = vrot.lane.b32.xlu0 %v345, 8
        %v370 = vpop.permute.xlu0 %369
        %371 = vrot.lane.b32.xlu0 %v346, 8
        %v372 = vpop.permute.xlu0 %371
        %vm377 = vcmask 64512
        %v378 = vsel %vm377, %v354, %v366
        %v379 = vsel %vm377, %v356, %v368
        %v380 = vsel %vm377, %v358, %v370
        %v381 = vsel %vm377, %v360, %v372
        %v382 = vsel %vm348, %v378, %v343
        %v383 = vsel %vm348, %v379, %v344
        %v384 = vsel %vm348, %v380, %v345
        %v385 = vsel %vm348, %v381, %v346
        %vm386 = vcmask 36864
        %387 = vst.msk [vmem:[%s165] sm:$0x1f] %vm386, %v382
        %388 = vst.msk [vmem:[%s165 + $0x8] sm:$0x1f] %vm386, %v383
        %389 = vst.msk [vmem:[%s165 + $0x10] sm:$0x1f] %vm386, %v384
        %390 = vst.msk [vmem:[%s165 + $0x18] sm:$0x1f] %vm386, %v385
        %s391 = smul.u32 4, %s19
        %p392 = scmp.lt.s32.totalorder %s391, 7
        %s393 = scalar_select %p392, %s391, 7
        %p394 = scmp.lt.s32.totalorder %s20, 0
        %s395 = scalar_select %p394, %s20, 0
        %s396 = sadd.s32 %s395, %s393
        %s397 = smul.addr %s396, 8
        %s398 = scalar_lea.vmem %s1, %s397
        // Predicated region
        $region29: #{maxpool2d_3x3.1} parent=23 // pred_check
          %p399 = pneg %p75
        $region30: #{maxpool2d_3x3.1} parent=23 // pred_check_branch
          %401 = sbr.rel (%p399) target = $region32
        $region31: #{maxpool2d_3x3.1} parent=23 // pred_region
          %s402 = smul.u32 4, %s19
        $region32: #{maxpool2d_3x3.1} parent=23 // pred_fallthru
          _
      $region24: #{maxpool2d_3x3.1} parent=5 // pred_fallthru
        _
      %p403 = scmp.le.s32.totalorder 2, %s10
      // Predicated region
      $region33: #{maxpool2d_3x3.1} parent=5 // pred_check
        %p404 = pneg %p403
      $region34: #{maxpool2d_3x3.1} parent=5 // pred_check_branch
        %406 = sbr.rel (%p404) target = $region36
      $region35: #{maxpool2d_3x3.1} parent=5 // pred_region
        %s407 = ssub.s32 %s10, 2
        // Predicated region
        $region37: #{maxpool2d_3x3.1} parent=35 // pred_check
          %p408 = pneg %p81
        $region38: #{maxpool2d_3x3.1} parent=35 // pred_check_branch
          %410 = sbr.rel (%p408) target = $region40
        $region39: #{maxpool2d_3x3.1} parent=35 // pred_region
          %s411 = smul.u32 4, %s21
          %p412 = scmp.lt.s32.totalorder %s411, 7
          %s413 = scalar_select %p412, %s411, 7
          %p414 = scmp.lt.s32.totalorder %s22, 0
          %s415 = scalar_select %p414, %s22, 0
          %s416 = sadd.s32 %s415, %s413
          %s417 = smul.addr %s416, 8
          %s418 = scalar_lea.vmem %s1, %s417
        $region40: #{maxpool2d_3x3.1} parent=35 // pred_fallthru
          _
      $region36: #{maxpool2d_3x3.1} parent=5 // pred_fallthru
        _
    $region6: #{maxpool2d_3x3.1} parent=1 // loop_footer
      %s14 = sadd.s32 1, %s10
    $region7: #{maxpool2d_3x3.1} parent=1 // loop_footer_branch
      %9 = sbr.rel target = $region3
    $region8: #{maxpool2d_3x3.1} parent=1 // loop_exit
      _
    %419 = vsyncpa [#allocation3], 1
    %s420 = scalar_lea.sflag [#allocation3], 1
    %421 = vsyncpa %s420, 1

</llo_original>
